<compile_context>
chip_gen: v7x
topology: tpu7x:2x2x1
jax: 0.10.0
libtpu: 0.0.40
codegen_flags: <defaults>
</compile_context>

<pallas_src>
import functools
import math

import jax
import jax.numpy as jnp
from jax import lax
from jax.experimental import pallas as pl
from jax.experimental.pallas import tpu as pltpu


def _self_attn_label_kernel(labels_ref, mask_ref, emb_ref,
                            wq_ref, wk_ref, wv_ref,
                            bq_ref, bk_ref, bv_ref,
                            wout_ref, bout_ref, o_ref, *, num_heads):
    C, E = emb_ref.shape
    H = num_heads
    Lp = o_ref.shape[0]
    cdt = wq_ref.dtype          # MXU operand dtype (f32, or bf16 on v6e/v7x);
                                # accumulation + softmax are always f32 (v5e-safe).

    w = emb_ref[...].astype(cdt)                                              # (C, E)

    # --- K / V over all classes: two full-width (K = E) matmuls.
    #     No per-head slabs, no unaligned lane slices, no stacks.
    k = jnp.dot(w, wk_ref[...], preferred_element_type=jnp.float32) + bk_ref[...]   # (C, E) f32
    v = jnp.dot(w, wv_ref[...], preferred_element_type=jnp.float32) + bv_ref[...]   # (C, E) f32

    # --- Gather-then-attend: only the labeled rows ever become queries.
    #     (Out-of-range labels give all-zero one-hot rows -> zero output rows;
    #      torch advanced indexing would raise instead.)
    class_ids = lax.broadcasted_iota(jnp.int32, (Lp, C), 1)
    onehot = (labels_ref[...] == class_ids).astype(cdt)                       # (Lp, C)
    w_lab = jnp.dot(onehot, w, preferred_element_type=jnp.float32)            # (Lp, E) f32
    q = jnp.dot(w_lab.astype(cdt), wq_ref[...],
                preferred_element_type=jnp.float32) + bq_ref[...]             # (Lp, E); 1/sqrt(hd) pre-folded

    # --- All-heads scores with ONE matmul: replicate the query block per head
    #     (major-axis concat, layout-preserving), zero the other heads' lanes
    #     with the precomputed mask, contract against full-width K (A @ B^T).
    mask = mask_ref[...]                                                      # (H*Lp, E) f32
    q_rep = jnp.concatenate([q] * H, axis=0) * mask                           # (H*Lp, E) f32
    s = lax.dot_general(q_rep.astype(cdt), k.astype(cdt),
                        dimension_numbers=(((1,), (1,)), ((), ())),
                        preferred_element_type=jnp.float32)                   # (H*Lp, C)

    # --- Softmax over classes (f32, exact divide: parity with torch numerics).
    s = s - jnp.max(s, axis=-1, keepdims=True)
    p = jnp.exp(s)
    p = p / jnp.sum(p, axis=-1, keepdims=True)                                # (H*Lp, C) f32
    # TODO(synk): nn.MultiheadAttention applies dropout(p=0.1) to `p` in training
    # mode; this kernel implements eval-mode (no-dropout) semantics.

    # --- PV for all heads with ONE matmul; re-assemble the head-concatenated
    #     context by masking each head's lane block and summing sublane-aligned
    #     row blocks (8 cheap VPU adds — no reshuffle, no lane concat).
    pv = jnp.dot(p.astype(cdt), v.astype(cdt),
                 preferred_element_type=jnp.float32) * mask                   # (H*Lp, E) f32
    ctx = pv[0:Lp, :]
    for h in range(1, H):
        ctx = ctx + pv[h * Lp:(h + 1) * Lp, :]                                # (Lp, E) f32

    # --- Output projection: ONE K = E matmul against the original (E, E) weight.
    out = jnp.dot(ctx.astype(cdt), wout_ref[...],
                  preferred_element_type=jnp.float32) + bout_ref[...]         # (Lp, E)
    # NOTE: E = 64 (< 128 lanes) -> masked stores; acceptable at this size.
    o_ref[...] = out.astype(o_ref.dtype)


def prepare_weights(wqkv, bqkv, wout, bout, *, num_heads, param_dtype=jnp.float32):
    """One-time (offline) weight transform.

    * splits the fused QKV projection into separate (E, E) matrices so the kernel
      never lane-slices a (., 3E) activation,
    * folds 1/sqrt(head_dim) into the Q weights/bias,
    * builds the per-head lane-selection mask,
    * casts the large matmul operands to `param_dtype`
      (bf16 recommended on v6e/v7x; keep f32 on v5e).  Biases stay f32.

    NOTE: torch in_proj_weight is (3E, E) row-stacked [Wq; Wk; Wv]; transpose it
    to (E, 3E) (x @ W convention) before calling.
    """
    E = wout.shape[0]
    H = num_heads
    hd = E // H
    assert E % H == 0
    assert wqkv.shape == (E, 3 * E), "expected (E, 3E); transpose torch in_proj_weight first"
    assert bqkv.shape == (1, 3 * E) and wout.shape == (E, E) and bout.shape == (1, E)

    scale = 1.0 / math.sqrt(hd)
    wq = (wqkv[:, :E] * scale).astype(param_dtype)
    wk = wqkv[:, E:2 * E].astype(param_dtype)
    wv = wqkv[:, 2 * E:].astype(param_dtype)
    bq = (bqkv[:, :E] * scale).astype(jnp.float32)
    bk = bqkv[:, E:2 * E].astype(jnp.float32)
    bv = bqkv[:, 2 * E:].astype(jnp.float32)
    wout_p = wout.astype(param_dtype)
    bout_p = bout.astype(jnp.float32)

    head_of_col = jnp.arange(E, dtype=jnp.int32) // hd                          # (E,)
    head_mask = (head_of_col[None, :] ==
                 jnp.arange(H, dtype=jnp.int32)[:, None]).astype(jnp.float32)   # (H, E)
    return wq, wk, wv, bq, bk, bv, wout_p, bout_p, head_mask


def self_attn_label_encode(labels, emb_w, params, *, num_heads=8):
    """Pallas-backed SelfAttnLabelEncoder.forward (expects prepare_weights output)."""
    wq, wk, wv, bq, bk, bv, wout, bout, head_mask = params
    C, E = emb_w.shape
    H = num_heads
    L = labels.shape[0]
    Lp = ((L + 7) // 8) * 8                              # sublane-aligned query-row count
    labels2d = jnp.pad(labels.astype(jnp.int32).reshape(L, 1), ((0, Lp - L), (0, 0)))
    # Replicated per-head lane-selection mask: row r selects head r // Lp.
    mask_rep = jnp.repeat(head_mask, Lp, axis=0)         # (H*Lp, E) f32

    flops = 2 * (Lp * C * E           # label-row gather
                 + Lp * E * E         # Q projection
                 + 2 * C * E * E      # K / V projections
                 + H * Lp * E * C     # scores
                 + H * Lp * C * E     # PV
                 + Lp * E * E)        # output projection
    operands = (labels2d, mask_rep, emb_w, wq, wk, wv, bq, bk, bv, wout, bout)
    bytes_accessed = sum(int(x.size) * x.dtype.itemsize for x in operands) + Lp * E * 4

    out = pl.pallas_call(
        functools.partial(_self_attn_label_kernel, num_heads=num_heads),
        out_shape=jax.ShapeDtypeStruct((Lp, E), jnp.float32),
        in_specs=[pl.BlockSpec(memory_space=pltpu.MemorySpace.VMEM)] * len(operands),
        out_specs=pl.BlockSpec(memory_space=pltpu.MemorySpace.VMEM),
        cost_estimate=pl.CostEstimate(flops=int(flops),
                                      transcendentals=int(H * Lp * C),
                                      bytes_accessed=int(bytes_accessed)),
    )(*operands)
    return out[:L]


def _reference(labels, emb_w, wqkv, bqkv, wout, bout, *, num_heads=8):
    """Pure-JAX reference of eval-mode nn.MultiheadAttention self-attention (raw f32 weights)."""
    C, E = emb_w.shape
    hd = E // num_heads
    qkv = jnp.dot(emb_w, wqkv, precision="highest") + bqkv[0]
    q = qkv[:, :E] / math.sqrt(hd)
    k = qkv[:, E:2 * E]
    v = qkv[:, 2 * E:]
    qh = q.reshape(C, num_heads, hd).transpose(1, 0, 2)
    kh = k.reshape(C, num_heads, hd).transpose(1, 0, 2)
    vh = v.reshape(C, num_heads, hd).transpose(1, 0, 2)
    s = jnp.einsum("hqd,hkd->hqk", qh, kh, precision="highest")
    p = jax.nn.softmax(s, axis=-1)
    o = jnp.einsum("hqk,hkd->hqd", p, vh, precision="highest")
    o = o.transpose(1, 0, 2).reshape(C, E)
    out = jnp.dot(o, wout, precision="highest") + bout[0]
    return out[labels]


if __name__ == "__main__":
    num_classes = 32     # C  (sequence length of the self-attention)
    num_feats = 64       # E  (embedding dim, 8 heads -> head_dim 8)
    num_heads = 8
    num_labels = 8

    key = jax.random.PRNGKey(0)
    k_emb, k_wqkv, k_bqkv, k_wout, k_bout, k_lab = jax.random.split(key, 6)

    # nn.init.uniform_(label_embed.weight) -> U[0, 1)
    emb_w = jax.random.uniform(k_emb, (num_classes, num_feats), jnp.float32)
    # MultiheadAttention params (deterministic synthetic init, stored transposed).
    wqkv = jax.random.normal(k_wqkv, (num_feats, 3 * num_feats), jnp.float32) * 0.1
    bqkv = jax.random.normal(k_bqkv, (1, 3 * num_feats), jnp.float32) * 0.01
    wout = jax.random.normal(k_wout, (num_feats, num_feats), jnp.float32) * 0.1
    bout = jax.random.normal(k_bout, (1, num_feats), jnp.float32) * 0.01

    labels = jax.random.randint(k_lab, (num_labels,), 0, num_classes, jnp.int32)

    ref = _reference(labels, emb_w, wqkv, bqkv, wout, bout, num_heads=num_heads)

    # f32 parameter storage: exact-divide softmax + f32 throughout -> tight check.
    params_f32 = prepare_weights(wqkv, bqkv, wout, bout,
                                 num_heads=num_heads, param_dtype=jnp.float32)
    out_f32 = self_attn_label_encode(labels, emb_w, params_f32, num_heads=num_heads)
    out_f32 = jax.block_until_ready(out_f32)
    assert out_f32.shape == (num_labels, num_feats)
    assert jnp.allclose(out_f32, ref, atol=2e-4, rtol=2e-4), "f32 kernel mismatch vs JAX reference"

    # bf16 parameter storage (v6e/v7x lever: half the operand bytes, bf16 MXU
    # operands, f32 accumulation & f32 softmax).  Looser tolerance only reflects
    # bf16 weight rounding; on v5e keep param_dtype=jnp.float32.
    params_bf16 = prepare_weights(wqkv, bqkv, wout, bout,
                                  num_heads=num_heads, param_dtype=jnp.bfloat16)
    out_bf16 = self_attn_label_encode(labels, emb_w.astype(jnp.bfloat16), params_bf16,
                                      num_heads=num_heads)
    out_bf16 = jax.block_until_ready(out_bf16)
    assert jnp.allclose(out_bf16, ref, atol=3e-2, rtol=3e-2), "bf16 kernel mismatch vs JAX reference"

    print("KERNEL_OK")
</pallas_src>

<mosaic_0001>
module attributes {stable_mosaic.version = 11 : i64} {
  func.func @_self_attn_label_kernel(%arg0: memref<8x1xi32, #tpu.memory_space<vmem>>, %arg1: memref<64x64xf32, #tpu.memory_space<vmem>>, %arg2: memref<32x64xf32, #tpu.memory_space<vmem>>, %arg3: memref<64x64xf32, #tpu.memory_space<vmem>>, %arg4: memref<64x64xf32, #tpu.memory_space<vmem>>, %arg5: memref<64x64xf32, #tpu.memory_space<vmem>>, %arg6: memref<1x64xf32, #tpu.memory_space<vmem>>, %arg7: memref<1x64xf32, #tpu.memory_space<vmem>>, %arg8: memref<1x64xf32, #tpu.memory_space<vmem>>, %arg9: memref<64x64xf32, #tpu.memory_space<vmem>>, %arg10: memref<1x64xf32, #tpu.memory_space<vmem>>, %arg11: memref<8x64xf32, #tpu.memory_space<vmem>>) attributes {dimension_semantics = [], scalar_prefetch = 0 : i64, scratch_operands = 0 : i64, tpu.core_type = #tpu.core_type<tc>} {
    %c0 = arith.constant 0 : index
    %c0_0 = arith.constant 0 : index
    %0 = vector.load %arg2[%c0, %c0_0] : memref<32x64xf32, #tpu.memory_space<vmem>>, vector<32x64xf32>
    %c0_1 = arith.constant 0 : index
    %c0_2 = arith.constant 0 : index
    %1 = vector.load %arg4[%c0_1, %c0_2] : memref<64x64xf32, #tpu.memory_space<vmem>>, vector<64x64xf32>
    %cst = arith.constant dense<0.000000e+00> : vector<32x64xf32>
    %2 = tpu.matmul %0, %1, %cst {dimension_numbers = #tpu.dot_dimension_numbers<[1], [0], [0], [1], [0, 0, 1, 1], [], []>} : vector<32x64xf32>, vector<64x64xf32>, vector<32x64xf32> -> vector<32x64xf32>
    %c0_3 = arith.constant 0 : index
    %c0_4 = arith.constant 0 : index
    %3 = vector.load %arg7[%c0_3, %c0_4] : memref<1x64xf32, #tpu.memory_space<vmem>>, vector<1x64xf32>
    %4 = vector.broadcast %3 : vector<1x64xf32> to vector<32x64xf32>
    %5 = arith.addf %2, %4 : vector<32x64xf32>
    %c0_5 = arith.constant 0 : index
    %c0_6 = arith.constant 0 : index
    %6 = vector.load %arg5[%c0_5, %c0_6] : memref<64x64xf32, #tpu.memory_space<vmem>>, vector<64x64xf32>
    %cst_7 = arith.constant dense<0.000000e+00> : vector<32x64xf32>
    %7 = tpu.matmul %0, %6, %cst_7 {dimension_numbers = #tpu.dot_dimension_numbers<[1], [0], [0], [1], [0, 0, 1, 1], [], []>} : vector<32x64xf32>, vector<64x64xf32>, vector<32x64xf32> -> vector<32x64xf32>
    %c0_8 = arith.constant 0 : index
    %c0_9 = arith.constant 0 : index
    %8 = vector.load %arg8[%c0_8, %c0_9] : memref<1x64xf32, #tpu.memory_space<vmem>>, vector<1x64xf32>
    %9 = vector.broadcast %8 : vector<1x64xf32> to vector<32x64xf32>
    %10 = arith.addf %7, %9 : vector<32x64xf32>
    %11 = tpu.iota {dimensions = array<i32: 1>} : vector<8x32xi32>
    %c0_10 = arith.constant 0 : index
    %c0_11 = arith.constant 0 : index
    %12 = vector.load %arg0[%c0_10, %c0_11] : memref<8x1xi32, #tpu.memory_space<vmem>>, vector<8x1xi32>
    %13 = vector.broadcast %12 : vector<8x1xi32> to vector<8x32xi32>
    %14 = arith.cmpi eq, %13, %11 : vector<8x32xi32>
    %15 = arith.extui %14 : vector<8x32xi1> to vector<8x32xi32>
    %16 = arith.sitofp %15 : vector<8x32xi32> to vector<8x32xf32>
    %cst_12 = arith.constant dense<0.000000e+00> : vector<8x64xf32>
    %17 = tpu.matmul %16, %0, %cst_12 {dimension_numbers = #tpu.dot_dimension_numbers<[1], [0], [0], [1], [0, 0, 1, 1], [], []>} : vector<8x32xf32>, vector<32x64xf32>, vector<8x64xf32> -> vector<8x64xf32>
    %c0_13 = arith.constant 0 : index
    %c0_14 = arith.constant 0 : index
    %18 = vector.load %arg3[%c0_13, %c0_14] : memref<64x64xf32, #tpu.memory_space<vmem>>, vector<64x64xf32>
    %cst_15 = arith.constant dense<0.000000e+00> : vector<8x64xf32>
    %19 = tpu.matmul %17, %18, %cst_15 {dimension_numbers = #tpu.dot_dimension_numbers<[1], [0], [0], [1], [0, 0, 1, 1], [], []>} : vector<8x64xf32>, vector<64x64xf32>, vector<8x64xf32> -> vector<8x64xf32>
    %c0_16 = arith.constant 0 : index
    %c0_17 = arith.constant 0 : index
    %20 = vector.load %arg6[%c0_16, %c0_17] : memref<1x64xf32, #tpu.memory_space<vmem>>, vector<1x64xf32>
    %21 = vector.broadcast %20 : vector<1x64xf32> to vector<8x64xf32>
    %22 = arith.addf %19, %21 : vector<8x64xf32>
    %c0_18 = arith.constant 0 : index
    %c0_19 = arith.constant 0 : index
    %23 = vector.load %arg1[%c0_18, %c0_19] : memref<64x64xf32, #tpu.memory_space<vmem>>, vector<64x64xf32>
    %24 = tpu.concatenate %22, %22, %22, %22, %22, %22, %22, %22 in 0 : vector<8x64xf32>, vector<8x64xf32>, vector<8x64xf32>, vector<8x64xf32>, vector<8x64xf32>, vector<8x64xf32>, vector<8x64xf32>, vector<8x64xf32> -> vector<64x64xf32>
    %25 = arith.mulf %24, %23 : vector<64x64xf32>
    %cst_20 = arith.constant dense<0.000000e+00> : vector<64x32xf32>
    %26 = tpu.matmul %25, %5, %cst_20 {dimension_numbers = #tpu.dot_dimension_numbers<[1], [1], [0], [0], [0, 0, 1, 0], [], []>} : vector<64x64xf32>, vector<32x64xf32>, vector<64x32xf32> -> vector<64x32xf32>
    %cst_21 = arith.constant dense<0xFF800000> : vector<64xf32>
    %27 = vector.multi_reduction <maximumf>, %26, %cst_21 [1] : vector<64x32xf32> to vector<64xf32>
    %28 = vector.shape_cast %27 : vector<64xf32> to vector<64x1xf32>
    %29 = vector.broadcast %28 : vector<64x1xf32> to vector<64x32xf32>
    %30 = arith.subf %26, %29 : vector<64x32xf32>
    %31 = math.exp %30 : vector<64x32xf32>
    %cst_22 = arith.constant dense<0.000000e+00> : vector<64xf32>
    %32 = vector.multi_reduction <add>, %31, %cst_22 [1] : vector<64x32xf32> to vector<64xf32>
    %33 = vector.shape_cast %32 : vector<64xf32> to vector<64x1xf32>
    %34 = vector.broadcast %33 : vector<64x1xf32> to vector<64x32xf32>
    %35 = arith.divf %31, %34 : vector<64x32xf32>
    %cst_23 = arith.constant dense<0.000000e+00> : vector<64x64xf32>
    %36 = tpu.matmul %35, %10, %cst_23 {dimension_numbers = #tpu.dot_dimension_numbers<[1], [0], [0], [1], [0, 0, 1, 1], [], []>} : vector<64x32xf32>, vector<32x64xf32>, vector<64x64xf32> -> vector<64x64xf32>
    %37 = arith.mulf %36, %23 : vector<64x64xf32>
    %38 = vector.extract_strided_slice %37 {offsets = [0, 0], sizes = [8, 64], strides = [1, 1]} : vector<64x64xf32> to vector<8x64xf32>
    %39 = vector.extract_strided_slice %37 {offsets = [8, 0], sizes = [8, 64], strides = [1, 1]} : vector<64x64xf32> to vector<8x64xf32>
    %40 = arith.addf %38, %39 : vector<8x64xf32>
    %41 = vector.extract_strided_slice %37 {offsets = [16, 0], sizes = [8, 64], strides = [1, 1]} : vector<64x64xf32> to vector<8x64xf32>
    %42 = arith.addf %40, %41 : vector<8x64xf32>
    %43 = vector.extract_strided_slice %37 {offsets = [24, 0], sizes = [8, 64], strides = [1, 1]} : vector<64x64xf32> to vector<8x64xf32>
    %44 = arith.addf %42, %43 : vector<8x64xf32>
    %45 = vector.extract_strided_slice %37 {offsets = [32, 0], sizes = [8, 64], strides = [1, 1]} : vector<64x64xf32> to vector<8x64xf32>
    %46 = arith.addf %44, %45 : vector<8x64xf32>
    %47 = vector.extract_strided_slice %37 {offsets = [40, 0], sizes = [8, 64], strides = [1, 1]} : vector<64x64xf32> to vector<8x64xf32>
    %48 = arith.addf %46, %47 : vector<8x64xf32>
    %49 = vector.extract_strided_slice %37 {offsets = [48, 0], sizes = [8, 64], strides = [1, 1]} : vector<64x64xf32> to vector<8x64xf32>
    %50 = arith.addf %48, %49 : vector<8x64xf32>
    %51 = vector.extract_strided_slice %37 {offsets = [56, 0], sizes = [8, 64], strides = [1, 1]} : vector<64x64xf32> to vector<8x64xf32>
    %52 = arith.addf %50, %51 : vector<8x64xf32>
    %c0_24 = arith.constant 0 : index
    %c0_25 = arith.constant 0 : index
    %53 = vector.load %arg9[%c0_24, %c0_25] : memref<64x64xf32, #tpu.memory_space<vmem>>, vector<64x64xf32>
    %cst_26 = arith.constant dense<0.000000e+00> : vector<8x64xf32>
    %54 = tpu.matmul %52, %53, %cst_26 {dimension_numbers = #tpu.dot_dimension_numbers<[1], [0], [0], [1], [0, 0, 1, 1], [], []>} : vector<8x64xf32>, vector<64x64xf32>, vector<8x64xf32> -> vector<8x64xf32>
    %c0_27 = arith.constant 0 : index
    %c0_28 = arith.constant 0 : index
    %55 = vector.load %arg10[%c0_27, %c0_28] : memref<1x64xf32, #tpu.memory_space<vmem>>, vector<1x64xf32>
    %56 = vector.broadcast %55 : vector<1x64xf32> to vector<8x64xf32>
    %57 = arith.addf %54, %56 : vector<8x64xf32>
    %c0_29 = arith.constant 0 : index
    %c0_30 = arith.constant 0 : index
    %58 = vector.load %arg11[%c0_29, %c0_30] : memref<8x64xf32, #tpu.memory_space<vmem>>, vector<8x64xf32>
    tpu.vector_store %arg11[%c0_29, %c0_30], %57 {strides = array<i32>} : memref<8x64xf32, #tpu.memory_space<vmem>>, vector<8x64xf32>,
    return
  }
}

</mosaic_0001>

<llo_original>
// kernel: tpu_custom_call.1
$region0: #{tpu_custom_call.1}
  #allocation0 [shape = 'u32[]', space=smem, size = 0x4, offset = 0x4, fixed_abs, tag = 'smem constant byte address 0x4 - core index']
  #allocation1 [shape = 'u32[144,128]{1,0:T(1,128)}', space=vmem, size = 0x12000, scoped, tag = 'internal scratch']
  %s0 = inlined_call_operand.vmem [shape: s32[8,1], index: 0, kind: input, shape index: {}]
  %s1 = inlined_call_operand.hbm [shape: f32[64,64], index: 1, kind: input, shape index: {}]
  %s2 = inlined_call_operand.hbm [shape: f32[32,64], index: 2, kind: input, shape index: {}]
  %s3 = inlined_call_operand.hbm [shape: f32[64,64], index: 3, kind: input, shape index: {}]
  %s4 = inlined_call_operand.hbm [shape: f32[64,64], index: 4, kind: input, shape index: {}]
  %s5 = inlined_call_operand.hbm [shape: f32[64,64], index: 5, kind: input, shape index: {}]
  %s6 = inlined_call_operand.vmem [shape: f32[1,64], index: 6, kind: input, shape index: {}]
  %s7 = inlined_call_operand.vmem [shape: f32[1,64], index: 7, kind: input, shape index: {}]
  %s8 = inlined_call_operand.vmem [shape: f32[1,64], index: 8, kind: input, shape index: {}]
  %s9 = inlined_call_operand.hbm [shape: f32[64,64], index: 9, kind: input, shape index: {}]
  %s10 = inlined_call_operand.vmem [shape: f32[1,64], index: 10, kind: input, shape index: {}]
  %s11 = inlined_call_operand.hbm [shape: f32[8,64], index: 11, kind: output, shape index: {}]
  %s12 = sld [smem:[#allocation0]]
  $region78: #{tpu_custom_call.1} parent=0
    _
  %s14 = ssub.s32 1, %s12
  %s15 = scalar_select 0, %s14, %s12
  $region1: #{tpu_custom_call.1} parent=0
    #allocation2 [shape = 'u8[32768]{0}', space=vmem, size = 0x8000, scoped, tag = 'input window, operand 1, single buffered']
    #allocation3 [shape = 's32[1]{0}', space=sflag, size = 0x4, scoped, tag = 'scoped memory for tpu_custom_call.1']
    #allocation4 [shape = 's32[1]{0}', space=sflag, size = 0x4, scoped, tag = 'scoped memory for tpu_custom_call.1']
    #allocation5 [shape = 'u8[16384]{0}', space=vmem, size = 0x4000, scoped, tag = 'input window, operand 2, single buffered']
    #allocation6 [shape = 's32[1]{0}', space=sflag, size = 0x4, scoped, tag = 'scoped memory for tpu_custom_call.1']
    #allocation7 [shape = 'u8[32768]{0}', space=vmem, size = 0x8000, scoped, tag = 'input window, operand 3, single buffered']
    #allocation8 [shape = 'u8[32768]{0}', space=vmem, size = 0x8000, scoped, tag = 'input window, operand 4, single buffered']
    #allocation9 [shape = 's32[1]{0}', space=sflag, size = 0x4, scoped, tag = 'scoped memory for tpu_custom_call.1']
    #allocation10 [shape = 'u8[32768]{0}', space=vmem, size = 0x8000, scoped, tag = 'input window, operand 5, single buffered']
    #allocation11 [shape = 'u8[32768]{0}', space=vmem, size = 0x8000, scoped, tag = 'input window, operand 9, single buffered']
    #allocation12 [shape = 's32[1]{0}', space=sflag, size = 0x4, scoped, tag = 'scoped memory for tpu_custom_call.1']
    #allocation13 [shape = 'u8[4096]{0}', space=vmem, size = 0x1000, scoped, tag = 'output window, operand 0, single buffered']
    %16 = vsyncpa [#allocation3], 0
    %17 = vsyncpa [#allocation6], 0
    %18 = vsyncpa [#allocation9], 0
    %19 = vsyncpa [#allocation12], 0
    %20 = vsyncpa [#allocation4], 0
    // Predicated region
    $region2: #{tpu_custom_call.1} parent=1 // pred_check
      _
    $region3: #{tpu_custom_call.1} parent=1 // pred_check_branch
      %22 = sbr.rel (0) target = $region5
    $region4: #{tpu_custom_call.1} parent=1 // pred_region
      _
    $region5: #{tpu_custom_call.1} parent=1 // pred_fallthru
      _
    // Predicated region
    $region6: #{tpu_custom_call.1} parent=1 // pred_check
      _
    $region7: #{tpu_custom_call.1} parent=1 // pred_check_branch
      %24 = sbr.rel (0) target = $region9
    $region8: #{tpu_custom_call.1} parent=1 // pred_region
      %s26 = ssub.s32 1024, 1024
      %27 = vsyncadd [#allocation3], %s26
      %s28 = sshll.u32 [#allocation2], 4
      %s29 = int_to_ptr.vmem [resolvable:$true] %s28
      %34 = dma.hbm_to_vmem [thread:$0]  %s1, 1024, %s29, [#allocation3], 128, 128, 8
    $region9: #{tpu_custom_call.1} parent=1 // pred_fallthru
      _
    // Predicated region
    $region10: #{tpu_custom_call.1} parent=1 // pred_check
      _
    $region11: #{tpu_custom_call.1} parent=1 // pred_check_branch
      %36 = sbr.rel (0) target = $region13
    $region12: #{tpu_custom_call.1} parent=1 // pred_region
      %s38 = ssub.s32 512, 512
      %39 = vsyncadd [#allocation6], %s38
      %s40 = sshll.u32 [#allocation5], 4
      %s41 = int_to_ptr.vmem [resolvable:$true] %s40
      %46 = dma.hbm_to_vmem [thread:$0]  %s2, 512, %s41, [#allocation6], 128, 128, 8
    $region13: #{tpu_custom_call.1} parent=1 // pred_fallthru
      _
    // Predicated region
    $region14: #{tpu_custom_call.1} parent=1 // pred_check
      _
    $region15: #{tpu_custom_call.1} parent=1 // pred_check_branch
      %48 = sbr.rel (0) target = $region17
    $region16: #{tpu_custom_call.1} parent=1 // pred_region
      %s50 = ssub.s32 1024, 1024
      %51 = vsyncadd [#allocation6], %s50
      %s52 = sshll.u32 [#allocation7], 4
      %s53 = int_to_ptr.vmem [resolvable:$true] %s52
      %58 = dma.hbm_to_vmem [thread:$0]  %s3, 1024, %s53, [#allocation6], 128, 128, 8
    $region17: #{tpu_custom_call.1} parent=1 // pred_fallthru
      _
    // Predicated region
    $region18: #{tpu_custom_call.1} parent=1 // pred_check
      _
    $region19: #{tpu_custom_call.1} parent=1 // pred_check_branch
      %60 = sbr.rel (0) target = $region21
    $region20: #{tpu_custom_call.1} parent=1 // pred_region
      %s62 = ssub.s32 1024, 1024
      %63 = vsyncadd [#allocation9], %s62
      %s64 = sshll.u32 [#allocation8], 4
      %s65 = int_to_ptr.vmem [resolvable:$true] %s64
      %70 = dma.hbm_to_vmem [thread:$0]  %s4, 1024, %s65, [#allocation9], 128, 128, 8
    $region21: #{tpu_custom_call.1} parent=1 // pred_fallthru
      _
    // Predicated region
    $region22: #{tpu_custom_call.1} parent=1 // pred_check
      _
    $region23: #{tpu_custom_call.1} parent=1 // pred_check_branch
      %72 = sbr.rel (0) target = $region25
    $region24: #{tpu_custom_call.1} parent=1 // pred_region
      %s74 = ssub.s32 1024, 1024
      %75 = vsyncadd [#allocation9], %s74
      %s76 = sshll.u32 [#allocation10], 4
      %s77 = int_to_ptr.vmem [resolvable:$true] %s76
      %82 = dma.hbm_to_vmem [thread:$0]  %s5, 1024, %s77, [#allocation9], 128, 128, 8
    $region25: #{tpu_custom_call.1} parent=1 // pred_fallthru
      _
    // Predicated region
    $region26: #{tpu_custom_call.1} parent=1 // pred_check
      _
    $region27: #{tpu_custom_call.1} parent=1 // pred_check_branch
      %84 = sbr.rel (0) target = $region29
    $region28: #{tpu_custom_call.1} parent=1 // pred_region
      _
    $region29: #{tpu_custom_call.1} parent=1 // pred_fallthru
      _
    // Predicated region
    $region30: #{tpu_custom_call.1} parent=1 // pred_check
      _
    $region31: #{tpu_custom_call.1} parent=1 // pred_check_branch
      %86 = sbr.rel (0) target = $region33
    $region32: #{tpu_custom_call.1} parent=1 // pred_region
      _
    $region33: #{tpu_custom_call.1} parent=1 // pred_fallthru
      _
    // Predicated region
    $region34: #{tpu_custom_call.1} parent=1 // pred_check
      _
    $region35: #{tpu_custom_call.1} parent=1 // pred_check_branch
      %88 = sbr.rel (0) target = $region37
    $region36: #{tpu_custom_call.1} parent=1 // pred_region
      _
    $region37: #{tpu_custom_call.1} parent=1 // pred_fallthru
      _
    // Predicated region
    $region38: #{tpu_custom_call.1} parent=1 // pred_check
      _
    $region39: #{tpu_custom_call.1} parent=1 // pred_check_branch
      %90 = sbr.rel (0) target = $region41
    $region40: #{tpu_custom_call.1} parent=1 // pred_region
      %s92 = ssub.s32 1024, 1024
      %93 = vsyncadd [#allocation12], %s92
      %s94 = sshll.u32 [#allocation11], 4
      %s95 = int_to_ptr.vmem [resolvable:$true] %s94
      %100 = dma.hbm_to_vmem [thread:$0]  %s9, 1024, %s95, [#allocation12], 128, 128, 8
    $region41: #{tpu_custom_call.1} parent=1 // pred_fallthru
      _
    // Predicated region
    $region42: #{tpu_custom_call.1} parent=1 // pred_check
      _
    $region43: #{tpu_custom_call.1} parent=1 // pred_check_branch
      %102 = sbr.rel (0) target = $region45
    $region44: #{tpu_custom_call.1} parent=1 // pred_region
      _
    $region45: #{tpu_custom_call.1} parent=1 // pred_fallthru
      _
    // Predicated region
    $region46: #{tpu_custom_call.1} parent=1 // pred_check
      _
    $region47: #{tpu_custom_call.1} parent=1 // pred_check_branch
      %104 = sbr.rel (0) target = $region49
    $region48: #{tpu_custom_call.1} parent=1 // pred_region
      %105 = dma.done [#allocation3], 1024
    $region49: #{tpu_custom_call.1} parent=1 // pred_fallthru
      _
    // Predicated region
    $region50: #{tpu_custom_call.1} parent=1 // pred_check
      _
    $region51: #{tpu_custom_call.1} parent=1 // pred_check_branch
      %107 = sbr.rel (0) target = $region53
    $region52: #{tpu_custom_call.1} parent=1 // pred_region
      %108 = dma.done [#allocation6], 512
    $region53: #{tpu_custom_call.1} parent=1 // pred_fallthru
      _
    // Predicated region
    $region54: #{tpu_custom_call.1} parent=1 // pred_check
      _
    $region55: #{tpu_custom_call.1} parent=1 // pred_check_branch
      %110 = sbr.rel (0) target = $region57
    $region56: #{tpu_custom_call.1} parent=1 // pred_region
      %111 = dma.done [#allocation6], 1024
    $region57: #{tpu_custom_call.1} parent=1 // pred_fallthru
      _
    // Predicated region
    $region58: #{tpu_custom_call.1} parent=1 // pred_check
      _
    $region59: #{tpu_custom_call.1} parent=1 // pred_check_branch
      %113 = sbr.rel (0) target = $region61
    $region60: #{tpu_custom_call.1} parent=1 // pred_region
      %114 = dma.done [#allocation9], 1024
    $region61: #{tpu_custom_call.1} parent=1 // pred_fallthru
      _
    // Predicated region
    $region62: #{tpu_custom_call.1} parent=1 // pred_check
      _
    $region63: #{tpu_custom_call.1} parent=1 // pred_check_branch
      %116 = sbr.rel (0) target = $region65
    $region64: #{tpu_custom_call.1} parent=1 // pred_region
      %117 = dma.done [#allocation9], 1024
    $region65: #{tpu_custom_call.1} parent=1 // pred_fallthru
      _
    // Predicated region
    $region66: #{tpu_custom_call.1} parent=1 // pred_check
      _
    $region67: #{tpu_custom_call.1} parent=1 // pred_check_branch
      %119 = sbr.rel (0) target = $region69
    $region68: #{tpu_custom_call.1} parent=1 // pred_region
      %120 = dma.done [#allocation12], 1024
    $region69: #{tpu_custom_call.1} parent=1 // pred_fallthru
      _
    %v121 = vld [vmem:[#allocation5] sm:$0xff]
    %v122 = vld [vmem:[#allocation5 + $0x8] sm:$0xff]
    %v123 = vld [vmem:[#allocation5 + $0x10] sm:$0xff]
    %v124 = vld [vmem:[#allocation5 + $0x18] sm:$0xff]
    %v125 = vld [vmem:[#allocation8] sm:$0xff]
    %v126 = vld [vmem:[#allocation8 + $0x8] sm:$0xff]
    %v127 = vld [vmem:[#allocation8 + $0x10] sm:$0xff]
    %v128 = vld [vmem:[#allocation8 + $0x18] sm:$0xff]
    %v129 = vld [vmem:[#allocation8 + $0x20] sm:$0xff]
    %v130 = vld [vmem:[#allocation8 + $0x28] sm:$0xff]
    %v131 = vld [vmem:[#allocation8 + $0x30] sm:$0xff]
    %v132 = vld [vmem:[#allocation8 + $0x38] sm:$0xff]
    %v133 = vld [vmem:[%s7] sm:$0x1]
    %v135 = vlaneseq
    %v136 = vshrl.u32 %v135, 7
    %v137 = vsub.s32 0, %v136
    %v138 = vrot.slane %v133, %v137
    %vm140 = vcmask 523264
    %v142 = vsel %vm140, %v121, 0
    %v145 = vsel %vm140, %v122, 0
    %v148 = vsel %vm140, %v123, 0
    %v151 = vsel %vm140, %v124, 0
    %153 = vmatprep.subr.mxu0 0.0
    %154 = vmatpush1.msra.mxu0 %v125
    %155 = vmatprep.subr.mxu0 0.0
    %156 = vmatpush1.msra.mxu0 %v126
    %157 = vmatprep.subr.mxu0 0.0
    %158 = vmatpush1.msra.mxu0 %v127
    %159 = vmatprep.subr.mxu0 0.0
    %160 = vmatpush1.msra.mxu0 %v128
    %161 = vmatprep.subr.mxu0 0.0
    %162 = vmatpush1.msra.mxu0 %v129
    %163 = vmatprep.subr.mxu0 0.0
    %164 = vmatpush1.msra.mxu0 %v130
    %165 = vmatprep.subr.mxu0 0.0
    %166 = vmatpush1.msra.mxu0 %v131
    %167 = vmatprep.subr.mxu0 0.0
    %168 = vmatpush1.msra.mxu0 %v132
    %169 = vmatprep.subr.mxu0 0.0
    %170 = vmatpush1.msra.mxu0 0.0
    %171 = vmatprep.subr.mxu0 0.0
    %172 = vmatpush1.msra.mxu0 0.0
    %173 = vmatprep.subr.mxu0 0.0
    %174 = vmatpush1.msra.mxu0 0.0
    %175 = vmatprep.subr.mxu0 0.0
    %176 = vmatpush1.msra.mxu0 0.0
    %177 = vmatprep.subr.mxu0 0.0
    %178 = vmatpush1.msra.mxu0 0.0
    %179 = vmatprep.subr.mxu0 0.0
    %180 = vmatpush1.msra.mxu0 0.0
    %181 = vmatprep.subr.mxu0 0.0
    %182 = vmatpush1.msra.mxu0 0.0
    %183 = vmatprep.subr.mxu0 0.0
    %184 = vmatpush1.msra.mxu0 0.0
    %185 = vmatprep.subr.mxu0 0.0
    %186 = vmatpush1.msra.mxu0 0.0
    %187 = vmatprep.subr.mxu0 0.0
    %188 = vmatpush1.msra.mxu0 0.0
    %189 = vmatprep.subr.mxu0 0.0
    %190 = vmatpush1.msra.mxu0 0.0
    %191 = vmatprep.subr.mxu0 0.0
    %192 = vmatpush1.msra.mxu0 0.0
    %193 = vmatprep.subr.mxu0 0.0
    %194 = vmatpush1.msra.mxu0 0.0
    %195 = vmatprep.subr.mxu0 0.0
    %196 = vmatpush1.msra.mxu0 0.0
    %197 = vmatprep.subr.mxu0 0.0
    %198 = vmatpush1.msra.mxu0 0.0
    %199 = vmatprep.subr.mxu0 0.0
    %200 = vmatpush1.msra.mxu0 0.0
    %201 = vmatprep.subr.mxu0 0.0
    %202 = vmatpush1.msra.mxu0 0.0
    %203 = vmatprep.subr.mxu0 0.0
    %204 = vmatpush1.msra.mxu0 0.0
    %205 = vmatprep.subr.mxu0 0.0
    %206 = vmatpush1.msra.mxu0 0.0
    %207 = vmatprep.subr.mxu0 0.0
    %208 = vmatpush1.msra.mxu0 0.0
    %209 = vmatprep.subr.mxu0 0.0
    %210 = vmatpush1.msra.mxu0 0.0
    %211 = vmatprep.subr.mxu0 0.0
    %212 = vmatpush1.msra.mxu0 0.0
    %213 = vmatprep.subr.mxu0 0.0
    %214 = vmatpush1.msra.mxu0 0.0
    %215 = vmatprep.subr.mxu0 0.0
    %216 = vmatpush1.msra.mxu0 0.0
    %217 = vmatprep.mubr.f32.mxu0 0.0
    %218 = vmatmul.mubr.f32.gmra.mrb[0].mxu0 %v142
    %v219 = vpop.f32.mrb[0].mxu0
    %v220 = vadd.f32 %v138, %v219
    %v221 = vpop.f32.mrb[0].mxu0
    %222 = vmatprep.mubr.f32.mxu0 0.0
    %223 = vmatmul.mubr.f32.gmra.mrb[0].mxu0 %v145
    %v224 = vpop.f32.mrb[0].mxu0
    %v225 = vadd.f32 %v138, %v224
    %v226 = vpop.f32.mrb[0].mxu0
    %227 = vmatprep.mubr.f32.mxu0 0.0
    %228 = vmatmul.mubr.f32.gmra.mrb[0].mxu0 %v148
    %v229 = vpop.f32.mrb[0].mxu0
    %v230 = vadd.f32 %v138, %v229
    %v231 = vpop.f32.mrb[0].mxu0
    %232 = vmatprep.mubr.f32.mxu0 0.0
    %233 = vmatmul.mubr.f32.gmra.mrb[0].mxu0 %v151
    %v234 = vpop.f32.mrb[0].mxu0
    %v235 = vadd.f32 %v138, %v234
    %v236 = vpop.f32.mrb[0].mxu0
    %237 = vdwg.mxu0
    %v238 = vld [vmem:[#allocation10] sm:$0xff]
    %v239 = vld [vmem:[#allocation10 + $0x8] sm:$0xff]
    %v240 = vld [vmem:[#allocation10 + $0x10] sm:$0xff]
    %v241 = vld [vmem:[#allocation10 + $0x18] sm:$0xff]
    %v242 = vld [vmem:[#allocation10 + $0x20] sm:$0xff]
    %v243 = vld [vmem:[#allocation10 + $0x28] sm:$0xff]
    %v244 = vld [vmem:[#allocation10 + $0x30] sm:$0xff]
    %v245 = vld [vmem:[#allocation10 + $0x38] sm:$0xff]
    %v246 = vld [vmem:[%s8] sm:$0x1]
    %v248 = vlaneseq
    %v249 = vshrl.u32 %v248, 7
    %v250 = vsub.s32 0, %v249
    %v251 = vrot.slane %v246, %v250
    %253 = vmatprep.subr.mxu0 0.0
    %254 = vmatpush1.msra.mxu0 %v238
    %255 = vmatprep.subr.mxu0 0.0
    %256 = vmatpush1.msra.mxu0 %v239
    %257 = vmatprep.subr.mxu0 0.0
    %258 = vmatpush1.msra.mxu0 %v240
    %259 = vmatprep.subr.mxu0 0.0
    %260 = vmatpush1.msra.mxu0 %v241
    %261 = vmatprep.subr.mxu0 0.0
    %262 = vmatpush1.msra.mxu0 %v242
    %263 = vmatprep.subr.mxu0 0.0
    %264 = vmatpush1.msra.mxu0 %v243
    %265 = vmatprep.subr.mxu0 0.0
    %266 = vmatpush1.msra.mxu0 %v244
    %267 = vmatprep.subr.mxu0 0.0
    %268 = vmatpush1.msra.mxu0 %v245
    %269 = vmatprep.subr.mxu0 0.0
    %270 = vmatpush1.msra.mxu0 0.0
    %271 = vmatprep.subr.mxu0 0.0
    %272 = vmatpush1.msra.mxu0 0.0
    %273 = vmatprep.subr.mxu0 0.0
    %274 = vmatpush1.msra.mxu0 0.0
    %275 = vmatprep.subr.mxu0 0.0
    %276 = vmatpush1.msra.mxu0 0.0
    %277 = vmatprep.subr.mxu0 0.0
    %278 = vmatpush1.msra.mxu0 0.0
    %279 = vmatprep.subr.mxu0 0.0
    %280 = vmatpush1.msra.mxu0 0.0
    %281 = vmatprep.subr.mxu0 0.0
    %282 = vmatpush1.msra.mxu0 0.0
    %283 = vmatprep.subr.mxu0 0.0
    %284 = vmatpush1.msra.mxu0 0.0
    %285 = vmatprep.subr.mxu0 0.0
    %286 = vmatpush1.msra.mxu0 0.0
    %287 = vmatprep.subr.mxu0 0.0
    %288 = vmatpush1.msra.mxu0 0.0
    %289 = vmatprep.subr.mxu0 0.0
    %290 = vmatpush1.msra.mxu0 0.0
    %291 = vmatprep.subr.mxu0 0.0
    %292 = vmatpush1.msra.mxu0 0.0
    %293 = vmatprep.subr.mxu0 0.0
    %294 = vmatpush1.msra.mxu0 0.0
    %295 = vmatprep.subr.mxu0 0.0
    %296 = vmatpush1.msra.mxu0 0.0
    %297 = vmatprep.subr.mxu0 0.0
    %298 = vmatpush1.msra.mxu0 0.0
    %299 = vmatprep.subr.mxu0 0.0
    %300 = vmatpush1.msra.mxu0 0.0
    %301 = vmatprep.subr.mxu0 0.0
    %302 = vmatpush1.msra.mxu0 0.0
    %303 = vmatprep.subr.mxu0 0.0
    %304 = vmatpush1.msra.mxu0 0.0
    %305 = vmatprep.subr.mxu0 0.0
    %306 = vmatpush1.msra.mxu0 0.0
    %307 = vmatprep.subr.mxu0 0.0
    %308 = vmatpush1.msra.mxu0 0.0
    %309 = vmatprep.subr.mxu0 0.0
    %310 = vmatpush1.msra.mxu0 0.0
    %311 = vmatprep.subr.mxu0 0.0
    %312 = vmatpush1.msra.mxu0 0.0
    %313 = vmatprep.subr.mxu0 0.0
    %314 = vmatpush1.msra.mxu0 0.0
    %315 = vmatprep.subr.mxu0 0.0
    %316 = vmatpush1.msra.mxu0 0.0
    %317 = vmatprep.mubr.f32.mxu0 0.0
    %318 = vmatmul.mubr.f32.gmra.mrb[0].mxu0 %v142
    %v319 = vpop.f32.mrb[0].mxu0
    %v320 = vadd.f32 %v251, %v319
    %v321 = vpop.f32.mrb[0].mxu0
    %322 = vmatprep.mubr.f32.mxu0 0.0
    %323 = vmatmul.mubr.f32.gmra.mrb[0].mxu0 %v145
    %v324 = vpop.f32.mrb[0].mxu0
    %v325 = vadd.f32 %v251, %v324
    %v326 = vpop.f32.mrb[0].mxu0
    %327 = vmatprep.mubr.f32.mxu0 0.0
    %328 = vmatmul.mubr.f32.gmra.mrb[0].mxu0 %v148
    %v329 = vpop.f32.mrb[0].mxu0
    %v330 = vadd.f32 %v251, %v329
    %v331 = vpop.f32.mrb[0].mxu0
    %332 = vmatprep.mubr.f32.mxu0 0.0
    %333 = vmatmul.mubr.f32.gmra.mrb[0].mxu0 %v151
    %v334 = vpop.f32.mrb[0].mxu0
    %v335 = vadd.f32 %v251, %v334
    %v336 = vpop.f32.mrb[0].mxu0
    %337 = vdwg.mxu0
    %v338 = vlaneseq
    %v339 = vand.u32 %v338, 127
    %v340 = vld [vmem:[%s0] sm:$0xff]
    %341 = vset.pattern.permute.xlu0 0
    %342 = vperm.xlu0 %341, %v340
    %v343 = vpop.permute.xlu0 %342
    %vm344 = vcmp.eq.s32.totalorder %v343, %v339
    %v345 = vsel %vm344, 1, 0
    %v346 = vcvt.s32.f32 %v345
    %vm347 = vcmask 261120
    %v349 = vsel %vm347, %v346, 0
    %351 = vmatprep.subr.mxu0 0.0
    %352 = vmatpush1.msra.mxu0 %v121
    %353 = vmatprep.subr.mxu0 0.0
    %354 = vmatpush1.msra.mxu0 %v122
    %355 = vmatprep.subr.mxu0 0.0
    %356 = vmatpush1.msra.mxu0 %v123
    %357 = vmatprep.subr.mxu0 0.0
    %358 = vmatpush1.msra.mxu0 %v124
    %359 = vmatprep.subr.mxu0 0.0
    %360 = vmatpush1.msra.mxu0 0.0
    %361 = vmatprep.subr.mxu0 0.0
    %362 = vmatpush1.msra.mxu0 0.0
    %363 = vmatprep.subr.mxu0 0.0
    %364 = vmatpush1.msra.mxu0 0.0
    %365 = vmatprep.subr.mxu0 0.0
    %366 = vmatpush1.msra.mxu0 0.0
    %367 = vmatprep.subr.mxu0 0.0
    %368 = vmatpush1.msra.mxu0 0.0
    %369 = vmatprep.subr.mxu0 0.0
    %370 = vmatpush1.msra.mxu0 0.0
    %371 = vmatprep.subr.mxu0 0.0
    %372 = vmatpush1.msra.mxu0 0.0
    %373 = vmatprep.subr.mxu0 0.0
    %374 = vmatpush1.msra.mxu0 0.0
    %375 = vmatprep.subr.mxu0 0.0
    %376 = vmatpush1.msra.mxu0 0.0
    %377 = vmatprep.subr.mxu0 0.0
    %378 = vmatpush1.msra.mxu0 0.0
    %379 = vmatprep.subr.mxu0 0.0
    %380 = vmatpush1.msra.mxu0 0.0
    %381 = vmatprep.subr.mxu0 0.0
    %382 = vmatpush1.msra.mxu0 0.0
    %383 = vmatprep.subr.mxu0 0.0
    %384 = vmatpush1.msra.mxu0 0.0
    %385 = vmatprep.subr.mxu0 0.0
    %386 = vmatpush1.msra.mxu0 0.0
    %387 = vmatprep.subr.mxu0 0.0
    %388 = vmatpush1.msra.mxu0 0.0
    %389 = vmatprep.subr.mxu0 0.0
    %390 = vmatpush1.msra.mxu0 0.0
    %391 = vmatprep.subr.mxu0 0.0
    %392 = vmatpush1.msra.mxu0 0.0
    %393 = vmatprep.subr.mxu0 0.0
    %394 = vmatpush1.msra.mxu0 0.0
    %395 = vmatprep.subr.mxu0 0.0
    %396 = vmatpush1.msra.mxu0 0.0
    %397 = vmatprep.subr.mxu0 0.0
    %398 = vmatpush1.msra.mxu0 0.0
    %399 = vmatprep.subr.mxu0 0.0
    %400 = vmatpush1.msra.mxu0 0.0
    %401 = vmatprep.subr.mxu0 0.0
    %402 = vmatpush1.msra.mxu0 0.0
    %403 = vmatprep.subr.mxu0 0.0
    %404 = vmatpush1.msra.mxu0 0.0
    %405 = vmatprep.subr.mxu0 0.0
    %406 = vmatpush1.msra.mxu0 0.0
    %407 = vmatprep.subr.mxu0 0.0
    %408 = vmatpush1.msra.mxu0 0.0
    %409 = vmatprep.subr.mxu0 0.0
    %410 = vmatpush1.msra.mxu0 0.0
    %411 = vmatprep.subr.mxu0 0.0
    %412 = vmatpush1.msra.mxu0 0.0
    %413 = vmatprep.subr.mxu0 0.0
    %414 = vmatpush1.msra.mxu0 0.0
    %415 = vmatprep.mubr.f32.mxu0 0.0
    %416 = vmatmul.mubr.f32.gmra.mrb[0].mxu0 %v349
    %v417 = vpop.f32.mrb[0].mxu0
    %v418 = vadd.f32 0.0, %v417
    %v419 = vpop.f32.mrb[0].mxu0
    %420 = vdwg.mxu0
    %v421 = vld [vmem:[#allocation7] sm:$0xff]
    %v422 = vld [vmem:[#allocation7 + $0x8] sm:$0xff]
    %v423 = vld [vmem:[#allocation7 + $0x10] sm:$0xff]
    %v424 = vld [vmem:[#allocation7 + $0x18] sm:$0xff]
    %v425 = vld [vmem:[#allocation7 + $0x20] sm:$0xff]
    %v426 = vld [vmem:[#allocation7 + $0x28] sm:$0xff]
    %v427 = vld [vmem:[#allocation7 + $0x30] sm:$0xff]
    %v428 = vld [vmem:[#allocation7 + $0x38] sm:$0xff]
    %v429 = vld [vmem:[%s6] sm:$0x1]
    %v431 = vlaneseq
    %v432 = vshrl.u32 %v431, 7
    %v433 = vsub.s32 0, %v432
    %v434 = vrot.slane %v429, %v433
    %v437 = vsel %vm140, %v418, 0
    %439 = vmatprep.subr.mxu0 0.0
    %440 = vmatpush1.msra.mxu0 %v421
    %441 = vmatprep.subr.mxu0 0.0
    %442 = vmatpush1.msra.mxu0 %v422
    %443 = vmatprep.subr.mxu0 0.0
    %444 = vmatpush1.msra.mxu0 %v423
    %445 = vmatprep.subr.mxu0 0.0
    %446 = vmatpush1.msra.mxu0 %v424
    %447 = vmatprep.subr.mxu0 0.0
    %448 = vmatpush1.msra.mxu0 %v425
    %449 = vmatprep.subr.mxu0 0.0
    %450 = vmatpush1.msra.mxu0 %v426
    %451 = vmatprep.subr.mxu0 0.0
    %452 = vmatpush1.msra.mxu0 %v427
    %453 = vmatprep.subr.mxu0 0.0
    %454 = vmatpush1.msra.mxu0 %v428
    %455 = vmatprep.subr.mxu0 0.0
    %456 = vmatpush1.msra.mxu0 0.0
    %457 = vmatprep.subr.mxu0 0.0
    %458 = vmatpush1.msra.mxu0 0.0
    %459 = vmatprep.subr.mxu0 0.0
    %460 = vmatpush1.msra.mxu0 0.0
    %461 = vmatprep.subr.mxu0 0.0
    %462 = vmatpush1.msra.mxu0 0.0
    %463 = vmatprep.subr.mxu0 0.0
    %464 = vmatpush1.msra.mxu0 0.0
    %465 = vmatprep.subr.mxu0 0.0
    %466 = vmatpush1.msra.mxu0 0.0
    %467 = vmatprep.subr.mxu0 0.0
    %468 = vmatpush1.msra.mxu0 0.0
    %469 = vmatprep.subr.mxu0 0.0
    %470 = vmatpush1.msra.mxu0 0.0
    %471 = vmatprep.subr.mxu0 0.0
    %472 = vmatpush1.msra.mxu0 0.0
    %473 = vmatprep.subr.mxu0 0.0
    %474 = vmatpush1.msra.mxu0 0.0
    %475 = vmatprep.subr.mxu0 0.0
    %476 = vmatpush1.msra.mxu0 0.0
    %477 = vmatprep.subr.mxu0 0.0
    %478 = vmatpush1.msra.mxu0 0.0
    %479 = vmatprep.subr.mxu0 0.0
    %480 = vmatpush1.msra.mxu0 0.0
    %481 = vmatprep.subr.mxu0 0.0
    %482 = vmatpush1.msra.mxu0 0.0
    %483 = vmatprep.subr.mxu0 0.0
    %484 = vmatpush1.msra.mxu0 0.0
    %485 = vmatprep.subr.mxu0 0.0
    %486 = vmatpush1.msra.mxu0 0.0
    %487 = vmatprep.subr.mxu0 0.0
    %488 = vmatpush1.msra.mxu0 0.0
    %489 = vmatprep.subr.mxu0 0.0
    %490 = vmatpush1.msra.mxu0 0.0
    %491 = vmatprep.subr.mxu0 0.0
    %492 = vmatpush1.msra.mxu0 0.0
    %493 = vmatprep.subr.mxu0 0.0
    %494 = vmatpush1.msra.mxu0 0.0
    %495 = vmatprep.subr.mxu0 0.0
    %496 = vmatpush1.msra.mxu0 0.0
    %497 = vmatprep.subr.mxu0 0.0
    %498 = vmatpush1.msra.mxu0 0.0
    %499 = vmatprep.subr.mxu0 0.0
    %500 = vmatpush1.msra.mxu0 0.0
    %501 = vmatprep.subr.mxu0 0.0
    %502 = vmatpush1.msra.mxu0 0.0
    %503 = vmatprep.mubr.f32.mxu0 0.0
    %504 = vmatmul.mubr.f32.gmra.mrb[0].mxu0 %v437
    %v505 = vpop.f32.mrb[0].mxu0
    %v506 = vadd.f32 %v434, %v505
    %v507 = vpop.f32.mrb[0].mxu0
    %508 = vdwg.mxu0
    %v509 = vld [vmem:[#allocation2] sm:$0xff]
    %v510 = vld [vmem:[#allocation2 + $0x8] sm:$0xff]
    %v511 = vld [vmem:[#allocation2 + $0x10] sm:$0xff]
    %v512 = vld [vmem:[#allocation2 + $0x18] sm:$0xff]
    %v513 = vld [vmem:[#allocation2 + $0x20] sm:$0xff]
    %v514 = vld [vmem:[#allocation2 + $0x28] sm:$0xff]
    %v515 = vld [vmem:[#allocation2 + $0x30] sm:$0xff]
    %v516 = vld [vmem:[#allocation2 + $0x38] sm:$0xff]
    %v517 = vmul.f32 %v506, %v509
    %v518 = vmul.f32 %v506, %v510
    %v519 = vmul.f32 %v506, %v511
    %v520 = vmul.f32 %v506, %v512
    %v521 = vmul.f32 %v506, %v513
    %v522 = vmul.f32 %v506, %v514
    %v523 = vmul.f32 %v506, %v515
    %v524 = vmul.f32 %v506, %v516
    %v526 = vsel %vm140, %v517, 0
    %v529 = vsel %vm140, %v518, 0
    %v532 = vsel %vm140, %v519, 0
    %v535 = vsel %vm140, %v520, 0
    %v538 = vsel %vm140, %v521, 0
    %v541 = vsel %vm140, %v522, 0
    %v544 = vsel %vm140, %v523, 0
    %v547 = vsel %vm140, %v524, 0
    %v550 = vsel %vm140, %v220, 0
    %v553 = vsel %vm140, %v225, 0
    %v556 = vsel %vm140, %v230, 0
    %v559 = vsel %vm140, %v235, 0
    %561 = vmatprep.subr.mxu0 0.0
    %562 = vmatpush1.xpose.msra.mxu0 %v550
    %563 = vmatprep.subr.mxu0 0.0
    %564 = vmatpush1.xpose.msra.mxu0 %v553
    %565 = vmatprep.subr.mxu0 0.0
    %566 = vmatpush1.xpose.msra.mxu0 %v556
    %567 = vmatprep.subr.mxu0 0.0
    %568 = vmatpush1.xpose.msra.mxu0 %v559
    %569 = vmatprep.subr.mxu0 0.0
    %570 = vmatpush1.xpose.msra.mxu0 0.0
    %571 = vmatprep.subr.mxu0 0.0
    %572 = vmatpush1.xpose.msra.mxu0 0.0
    %573 = vmatprep.subr.mxu0 0.0
    %574 = vmatpush1.xpose.msra.mxu0 0.0
    %575 = vmatprep.subr.mxu0 0.0
    %576 = vmatpush1.xpose.msra.mxu0 0.0
    %577 = vmatprep.subr.mxu0 0.0
    %578 = vmatpush1.xpose.msra.mxu0 0.0
    %579 = vmatprep.subr.mxu0 0.0
    %580 = vmatpush1.xpose.msra.mxu0 0.0
    %581 = vmatprep.subr.mxu0 0.0
    %582 = vmatpush1.xpose.msra.mxu0 0.0
    %583 = vmatprep.subr.mxu0 0.0
    %584 = vmatpush1.xpose.msra.mxu0 0.0
    %585 = vmatprep.subr.mxu0 0.0
    %586 = vmatpush1.xpose.msra.mxu0 0.0
    %587 = vmatprep.subr.mxu0 0.0
    %588 = vmatpush1.xpose.msra.mxu0 0.0
    %589 = vmatprep.subr.mxu0 0.0
    %590 = vmatpush1.xpose.msra.mxu0 0.0
    %591 = vmatprep.subr.mxu0 0.0
    %592 = vmatpush1.xpose.msra.mxu0 0.0
    %593 = vmatprep.subr.mxu0 0.0
    %594 = vmatpush1.xpose.msra.mxu0 0.0
    %595 = vmatprep.subr.mxu0 0.0
    %596 = vmatpush1.xpose.msra.mxu0 0.0
    %597 = vmatprep.subr.mxu0 0.0
    %598 = vmatpush1.xpose.msra.mxu0 0.0
    %599 = vmatprep.subr.mxu0 0.0
    %600 = vmatpush1.xpose.msra.mxu0 0.0
    %601 = vmatprep.subr.mxu0 0.0
    %602 = vmatpush1.xpose.msra.mxu0 0.0
    %603 = vmatprep.subr.mxu0 0.0
    %604 = vmatpush1.xpose.msra.mxu0 0.0
    %605 = vmatprep.subr.mxu0 0.0
    %606 = vmatpush1.xpose.msra.mxu0 0.0
    %607 = vmatprep.subr.mxu0 0.0
    %608 = vmatpush1.xpose.msra.mxu0 0.0
    %609 = vmatprep.subr.mxu0 0.0
    %610 = vmatpush1.xpose.msra.mxu0 0.0
    %611 = vmatprep.subr.mxu0 0.0
    %612 = vmatpush1.xpose.msra.mxu0 0.0
    %613 = vmatprep.subr.mxu0 0.0
    %614 = vmatpush1.xpose.msra.mxu0 0.0
    %615 = vmatprep.subr.mxu0 0.0
    %616 = vmatpush1.xpose.msra.mxu0 0.0
    %617 = vmatprep.subr.mxu0 0.0
    %618 = vmatpush1.xpose.msra.mxu0 0.0
    %619 = vmatprep.subr.mxu0 0.0
    %620 = vmatpush1.xpose.msra.mxu0 0.0
    %621 = vmatprep.subr.mxu0 0.0
    %622 = vmatpush1.xpose.msra.mxu0 0.0
    %623 = vmatprep.subr.mxu0 0.0
    %624 = vmatpush1.xpose.msra.mxu0 0.0
    %625 = vmatprep.mubr.f32.mxu0 0.0
    %626 = vmatmul.mubr.f32.gmra.mrb[0].mxu0 %v526
    %v627 = vpop.f32.mrb[0].mxu0
    %v628 = vadd.f32 0.0, %v627
    %v629 = vpop.f32.mrb[0].mxu0
    %630 = vmatprep.mubr.f32.mxu0 0.0
    %631 = vmatmul.mubr.f32.gmra.mrb[0].mxu0 %v529
    %v632 = vpop.f32.mrb[0].mxu0
    %v633 = vadd.f32 0.0, %v632
    %v634 = vpop.f32.mrb[0].mxu0
    %635 = vmatprep.mubr.f32.mxu0 0.0
    %636 = vmatmul.mubr.f32.gmra.mrb[0].mxu0 %v532
    %v637 = vpop.f32.mrb[0].mxu0
    %v638 = vadd.f32 0.0, %v637
    %v639 = vpop.f32.mrb[0].mxu0
    %640 = vmatprep.mubr.f32.mxu0 0.0
    %641 = vmatmul.mubr.f32.gmra.mrb[0].mxu0 %v535
    %v642 = vpop.f32.mrb[0].mxu0
    %v643 = vadd.f32 0.0, %v642
    %v644 = vpop.f32.mrb[0].mxu0
    %645 = vmatprep.mubr.f32.mxu0 0.0
    %646 = vmatmul.mubr.f32.gmra.mrb[0].mxu0 %v538
    %v647 = vpop.f32.mrb[0].mxu0
    %v648 = vadd.f32 0.0, %v647
    %v649 = vpop.f32.mrb[0].mxu0
    %650 = vmatprep.mubr.f32.mxu0 0.0
    %651 = vmatmul.mubr.f32.gmra.mrb[0].mxu0 %v541
    %v652 = vpop.f32.mrb[0].mxu0
    %v653 = vadd.f32 0.0, %v652
    %v654 = vpop.f32.mrb[0].mxu0
    %655 = vmatprep.mubr.f32.mxu0 0.0
    %656 = vmatmul.mubr.f32.gmra.mrb[0].mxu0 %v544
    %v657 = vpop.f32.mrb[0].mxu0
    %v658 = vadd.f32 0.0, %v657
    %v659 = vpop.f32.mrb[0].mxu0
    %660 = vmatprep.mubr.f32.mxu0 0.0
    %661 = vmatmul.mubr.f32.gmra.mrb[0].mxu0 %v547
    %v662 = vpop.f32.mrb[0].mxu0
    %v663 = vadd.f32 0.0, %v662
    %v664 = vpop.f32.mrb[0].mxu0
    %665 = vdwg.mxu0
    %v666 = vsel %vm347, %v628, -inf
    %667 = vmax.xlane.f32.xlu0 %v666
    %v668 = vpop.xlane.xlu0 %667
    %v669 = vsel %vm347, %v633, -inf
    %670 = vmax.xlane.f32.xlu0 %v669
    %v671 = vpop.xlane.xlu0 %670
    %v672 = vsel %vm347, %v638, -inf
    %673 = vmax.xlane.f32.xlu0 %v672
    %v674 = vpop.xlane.xlu0 %673
    %v675 = vsel %vm347, %v643, -inf
    %676 = vmax.xlane.f32.xlu0 %v675
    %v677 = vpop.xlane.xlu0 %676
    %v678 = vsel %vm347, %v648, -inf
    %679 = vmax.xlane.f32.xlu0 %v678
    %v680 = vpop.xlane.xlu0 %679
    %v681 = vsel %vm347, %v653, -inf
    %682 = vmax.xlane.f32.xlu0 %v681
    %v683 = vpop.xlane.xlu0 %682
    %v684 = vsel %vm347, %v658, -inf
    %685 = vmax.xlane.f32.xlu0 %v684
    %v686 = vpop.xlane.xlu0 %685
    %v687 = vsel %vm347, %v663, -inf
    %688 = vmax.xlane.f32.xlu0 %v687
    %v689 = vpop.xlane.xlu0 %688
    %v690 = vsub.f32 %v628, %v668
    %v691 = vsub.f32 %v633, %v671
    %v692 = vsub.f32 %v638, %v674
    %v693 = vsub.f32 %v643, %v677
    %v694 = vsub.f32 %v648, %v680
    %v695 = vsub.f32 %v653, %v683
    %v696 = vsub.f32 %v658, %v686
    %v697 = vsub.f32 %v663, %v689
    %v698 = vmul.f32 %v690, 1.442695
    %v699 = vpow.pop %v698
    %v700 = vmul.f32 %v691, 1.442695
    %v701 = vpow.pop %v700
    %v702 = vmul.f32 %v692, 1.442695
    %v703 = vpow.pop %v702
    %v704 = vmul.f32 %v693, 1.442695
    %v705 = vpow.pop %v704
    %v706 = vmul.f32 %v694, 1.442695
    %v707 = vpow.pop %v706
    %v708 = vmul.f32 %v695, 1.442695
    %v709 = vpow.pop %v708
    %v710 = vmul.f32 %v696, 1.442695
    %v711 = vpow.pop %v710
    %v712 = vmul.f32 %v697, 1.442695
    %v713 = vpow.pop %v712
    %v714 = vsel %vm347, %v699, 0.0
    %715 = vadd.xlane.f32.xlu0 %v714
    %v716 = vpop.xlane.xlu0 %715
    %v717 = vsel %vm347, %v701, 0.0
    %718 = vadd.xlane.f32.xlu0 %v717
    %v719 = vpop.xlane.xlu0 %718
    %v720 = vsel %vm347, %v703, 0.0
    %721 = vadd.xlane.f32.xlu0 %v720
    %v722 = vpop.xlane.xlu0 %721
    %v723 = vsel %vm347, %v705, 0.0
    %724 = vadd.xlane.f32.xlu0 %v723
    %v725 = vpop.xlane.xlu0 %724
    %v726 = vsel %vm347, %v707, 0.0
    %727 = vadd.xlane.f32.xlu0 %v726
    %v728 = vpop.xlane.xlu0 %727
    %v729 = vsel %vm347, %v709, 0.0
    %730 = vadd.xlane.f32.xlu0 %v729
    %v731 = vpop.xlane.xlu0 %730
    %v732 = vsel %vm347, %v711, 0.0
    %733 = vadd.xlane.f32.xlu0 %v732
    %v734 = vpop.xlane.xlu0 %733
    %v735 = vsel %vm347, %v713, 0.0
    %736 = vadd.xlane.f32.xlu0 %v735
    %v737 = vpop.xlane.xlu0 %736
    %v738 = vrcp.pop %v716
    %v739 = vmul.f32 %v699, %v738
    %v740 = vrcp.pop %v719
    %v741 = vmul.f32 %v701, %v740
    %v742 = vrcp.pop %v722
    %v743 = vmul.f32 %v703, %v742
    %v744 = vrcp.pop %v725
    %v745 = vmul.f32 %v705, %v744
    %v746 = vrcp.pop %v728
    %v747 = vmul.f32 %v707, %v746
    %v748 = vrcp.pop %v731
    %v749 = vmul.f32 %v709, %v748
    %v750 = vrcp.pop %v734
    %v751 = vmul.f32 %v711, %v750
    %v752 = vrcp.pop %v737
    %v753 = vmul.f32 %v713, %v752
    %v755 = vsel %vm347, %v739, 0
    %v758 = vsel %vm347, %v741, 0
    %v761 = vsel %vm347, %v743, 0
    %v764 = vsel %vm347, %v745, 0
    %v767 = vsel %vm347, %v747, 0
    %v770 = vsel %vm347, %v749, 0
    %v773 = vsel %vm347, %v751, 0
    %v776 = vsel %vm347, %v753, 0
    %778 = vmatprep.subr.mxu0 0.0
    %779 = vmatpush1.msra.mxu0 %v320
    %780 = vmatprep.subr.mxu0 0.0
    %781 = vmatpush1.msra.mxu0 %v325
    %782 = vmatprep.subr.mxu0 0.0
    %783 = vmatpush1.msra.mxu0 %v330
    %784 = vmatprep.subr.mxu0 0.0
    %785 = vmatpush1.msra.mxu0 %v335
    %786 = vmatprep.subr.mxu0 0.0
    %787 = vmatpush1.msra.mxu0 0.0
    %788 = vmatprep.subr.mxu0 0.0
    %789 = vmatpush1.msra.mxu0 0.0
    %790 = vmatprep.subr.mxu0 0.0
    %791 = vmatpush1.msra.mxu0 0.0
    %792 = vmatprep.subr.mxu0 0.0
    %793 = vmatpush1.msra.mxu0 0.0
    %794 = vmatprep.subr.mxu0 0.0
    %795 = vmatpush1.msra.mxu0 0.0
    %796 = vmatprep.subr.mxu0 0.0
    %797 = vmatpush1.msra.mxu0 0.0
    %798 = vmatprep.subr.mxu0 0.0
    %799 = vmatpush1.msra.mxu0 0.0
    %800 = vmatprep.subr.mxu0 0.0
    %801 = vmatpush1.msra.mxu0 0.0
    %802 = vmatprep.subr.mxu0 0.0
    %803 = vmatpush1.msra.mxu0 0.0
    %804 = vmatprep.subr.mxu0 0.0
    %805 = vmatpush1.msra.mxu0 0.0
    %806 = vmatprep.subr.mxu0 0.0
    %807 = vmatpush1.msra.mxu0 0.0
    %808 = vmatprep.subr.mxu0 0.0
    %809 = vmatpush1.msra.mxu0 0.0
    %810 = vmatprep.subr.mxu0 0.0
    %811 = vmatpush1.msra.mxu0 0.0
    %812 = vmatprep.subr.mxu0 0.0
    %813 = vmatpush1.msra.mxu0 0.0
    %814 = vmatprep.subr.mxu0 0.0
    %815 = vmatpush1.msra.mxu0 0.0
    %816 = vmatprep.subr.mxu0 0.0
    %817 = vmatpush1.msra.mxu0 0.0
    %818 = vmatprep.subr.mxu0 0.0
    %819 = vmatpush1.msra.mxu0 0.0
    %820 = vmatprep.subr.mxu0 0.0
    %821 = vmatpush1.msra.mxu0 0.0
    %822 = vmatprep.subr.mxu0 0.0
    %823 = vmatpush1.msra.mxu0 0.0
    %824 = vmatprep.subr.mxu0 0.0
    %825 = vmatpush1.msra.mxu0 0.0
    %826 = vmatprep.subr.mxu0 0.0
    %827 = vmatpush1.msra.mxu0 0.0
    %828 = vmatprep.subr.mxu0 0.0
    %829 = vmatpush1.msra.mxu0 0.0
    %830 = vmatprep.subr.mxu0 0.0
    %831 = vmatpush1.msra.mxu0 0.0
    %832 = vmatprep.subr.mxu0 0.0
    %833 = vmatpush1.msra.mxu0 0.0
    %834 = vmatprep.subr.mxu0 0.0
    %835 = vmatpush1.msra.mxu0 0.0
    %836 = vmatprep.subr.mxu0 0.0
    %837 = vmatpush1.msra.mxu0 0.0
    %838 = vmatprep.subr.mxu0 0.0
    %839 = vmatpush1.msra.mxu0 0.0
    %840 = vmatprep.subr.mxu0 0.0
    %841 = vmatpush1.msra.mxu0 0.0
    %842 = vmatprep.mubr.f32.mxu0 0.0
    %843 = vmatmul.mubr.f32.gmra.mrb[0].mxu0 %v755
    %v844 = vpop.f32.mrb[0].mxu0
    %v845 = vadd.f32 0.0, %v844
    %v846 = vpop.f32.mrb[0].mxu0
    %847 = vmatprep.mubr.f32.mxu0 0.0
    %848 = vmatmul.mubr.f32.gmra.mrb[0].mxu0 %v758
    %v849 = vpop.f32.mrb[0].mxu0
    %v850 = vadd.f32 0.0, %v849
    %v851 = vpop.f32.mrb[0].mxu0
    %852 = vmatprep.mubr.f32.mxu0 0.0
    %853 = vmatmul.mubr.f32.gmra.mrb[0].mxu0 %v761
    %v854 = vpop.f32.mrb[0].mxu0
    %v855 = vadd.f32 0.0, %v854
    %v856 = vpop.f32.mrb[0].mxu0
    %857 = vmatprep.mubr.f32.mxu0 0.0
    %858 = vmatmul.mubr.f32.gmra.mrb[0].mxu0 %v764
    %v859 = vpop.f32.mrb[0].mxu0
    %v860 = vadd.f32 0.0, %v859
    %v861 = vpop.f32.mrb[0].mxu0
    %862 = vmatprep.mubr.f32.mxu0 0.0
    %863 = vmatmul.mubr.f32.gmra.mrb[0].mxu0 %v767
    %v864 = vpop.f32.mrb[0].mxu0
    %v865 = vadd.f32 0.0, %v864
    %v866 = vpop.f32.mrb[0].mxu0
    %867 = vmatprep.mubr.f32.mxu0 0.0
    %868 = vmatmul.mubr.f32.gmra.mrb[0].mxu0 %v770
    %v869 = vpop.f32.mrb[0].mxu0
    %v870 = vadd.f32 0.0, %v869
    %v871 = vpop.f32.mrb[0].mxu0
    %872 = vmatprep.mubr.f32.mxu0 0.0
    %873 = vmatmul.mubr.f32.gmra.mrb[0].mxu0 %v773
    %v874 = vpop.f32.mrb[0].mxu0
    %v875 = vadd.f32 0.0, %v874
    %v876 = vpop.f32.mrb[0].mxu0
    %877 = vmatprep.mubr.f32.mxu0 0.0
    %878 = vmatmul.mubr.f32.gmra.mrb[0].mxu0 %v776
    %v879 = vpop.f32.mrb[0].mxu0
    %v880 = vadd.f32 0.0, %v879
    %v881 = vpop.f32.mrb[0].mxu0
    %882 = vdwg.mxu0
    %v883 = vmul.f32 %v845, %v509
    %v884 = vmul.f32 %v850, %v510
    %v885 = vmul.f32 %v855, %v511
    %v886 = vmul.f32 %v860, %v512
    %v887 = vmul.f32 %v865, %v513
    %v888 = vmul.f32 %v870, %v514
    %v889 = vmul.f32 %v875, %v515
    %v890 = vmul.f32 %v880, %v516
    %v891 = vadd.f32 %v883, %v884
    %v892 = vadd.f32 %v891, %v885
    %v893 = vadd.f32 %v892, %v886
    %v894 = vadd.f32 %v893, %v887
    %v895 = vadd.f32 %v894, %v888
    %v896 = vadd.f32 %v895, %v889
    %v897 = vadd.f32 %v896, %v890
    %v898 = vld [vmem:[#allocation11] sm:$0xff]
    %v899 = vld [vmem:[#allocation11 + $0x8] sm:$0xff]
    %v900 = vld [vmem:[#allocation11 + $0x10] sm:$0xff]
    %v901 = vld [vmem:[#allocation11 + $0x18] sm:$0xff]
    %v902 = vld [vmem:[#allocation11 + $0x20] sm:$0xff]
    %v903 = vld [vmem:[#allocation11 + $0x28] sm:$0xff]
    %v904 = vld [vmem:[#allocation11 + $0x30] sm:$0xff]
    %v905 = vld [vmem:[#allocation11 + $0x38] sm:$0xff]
    %v906 = vld [vmem:[%s10] sm:$0x1]
    %v908 = vlaneseq
    %v909 = vshrl.u32 %v908, 7
    %v910 = vsub.s32 0, %v909
    %v911 = vrot.slane %v906, %v910
    %v914 = vsel %vm140, %v897, 0
    %916 = vmatprep.subr.mxu0 0.0
    %917 = vmatpush1.msra.mxu0 %v898
    %918 = vmatprep.subr.mxu0 0.0
    %919 = vmatpush1.msra.mxu0 %v899
    %920 = vmatprep.subr.mxu0 0.0
    %921 = vmatpush1.msra.mxu0 %v900
    %922 = vmatprep.subr.mxu0 0.0
    %923 = vmatpush1.msra.mxu0 %v901
    %924 = vmatprep.subr.mxu0 0.0
    %925 = vmatpush1.msra.mxu0 %v902
    %926 = vmatprep.subr.mxu0 0.0
    %927 = vmatpush1.msra.mxu0 %v903
    %928 = vmatprep.subr.mxu0 0.0
    %929 = vmatpush1.msra.mxu0 %v904
    %930 = vmatprep.subr.mxu0 0.0
    %931 = vmatpush1.msra.mxu0 %v905
    %932 = vmatprep.subr.mxu0 0.0
    %933 = vmatpush1.msra.mxu0 0.0
    %934 = vmatprep.subr.mxu0 0.0
    %935 = vmatpush1.msra.mxu0 0.0
    %936 = vmatprep.subr.mxu0 0.0
    %937 = vmatpush1.msra.mxu0 0.0
    %938 = vmatprep.subr.mxu0 0.0
    %939 = vmatpush1.msra.mxu0 0.0
    %940 = vmatprep.subr.mxu0 0.0
    %941 = vmatpush1.msra.mxu0 0.0
    %942 = vmatprep.subr.mxu0 0.0
    %943 = vmatpush1.msra.mxu0 0.0
    %944 = vmatprep.subr.mxu0 0.0
    %945 = vmatpush1.msra.mxu0 0.0
    %946 = vmatprep.subr.mxu0 0.0
    %947 = vmatpush1.msra.mxu0 0.0
    %948 = vmatprep.subr.mxu0 0.0
    %949 = vmatpush1.msra.mxu0 0.0
    %950 = vmatprep.subr.mxu0 0.0
    %951 = vmatpush1.msra.mxu0 0.0
    %952 = vmatprep.subr.mxu0 0.0
    %953 = vmatpush1.msra.mxu0 0.0
    %954 = vmatprep.subr.mxu0 0.0
    %955 = vmatpush1.msra.mxu0 0.0
    %956 = vmatprep.subr.mxu0 0.0
    %957 = vmatpush1.msra.mxu0 0.0
    %958 = vmatprep.subr.mxu0 0.0
    %959 = vmatpush1.msra.mxu0 0.0
    %960 = vmatprep.subr.mxu0 0.0
    %961 = vmatpush1.msra.mxu0 0.0
    %962 = vmatprep.subr.mxu0 0.0
    %963 = vmatpush1.msra.mxu0 0.0
    %964 = vmatprep.subr.mxu0 0.0
    %965 = vmatpush1.msra.mxu0 0.0
    %966 = vmatprep.subr.mxu0 0.0
    %967 = vmatpush1.msra.mxu0 0.0
    %968 = vmatprep.subr.mxu0 0.0
    %969 = vmatpush1.msra.mxu0 0.0
    %970 = vmatprep.subr.mxu0 0.0
    %971 = vmatpush1.msra.mxu0 0.0
    %972 = vmatprep.subr.mxu0 0.0
    %973 = vmatpush1.msra.mxu0 0.0
    %974 = vmatprep.subr.mxu0 0.0
    %975 = vmatpush1.msra.mxu0 0.0
    %976 = vmatprep.subr.mxu0 0.0
    %977 = vmatpush1.msra.mxu0 0.0
    %978 = vmatprep.subr.mxu0 0.0
    %979 = vmatpush1.msra.mxu0 0.0
    %980 = vmatprep.mubr.f32.mxu0 0.0
    %981 = vmatmul.mubr.f32.gmra.mrb[0].mxu0 %v914
    %v982 = vpop.f32.mrb[0].mxu0
    %v983 = vadd.f32 %v911, %v982
    %v984 = vpop.f32.mrb[0].mxu0
    %985 = vdwg.mxu0
    %986 = vst.msk [vmem:[#allocation13] sm:$0xff] %vm140, %v983
    // Predicated region
    $region70: #{tpu_custom_call.1} parent=1 // pred_check
      _
    $region71: #{tpu_custom_call.1} parent=1 // pred_check_branch
      %988 = sbr.rel (0) target = $region73
    $region72: #{tpu_custom_call.1} parent=1 // pred_region
      %s990 = ssub.s32 128, 128
      %991 = vsyncadd [#allocation4], %s990
      %s993 = sshll.u32 [#allocation13], 4
      %s994 = int_to_ptr.vmem [resolvable:$true] %s993
      %996 = dma.vmem_to_hbm [thread:$0]  %s994, 128, %s11, [#allocation4]
    $region73: #{tpu_custom_call.1} parent=1 // pred_fallthru
      _
    // Predicated region
    $region74: #{tpu_custom_call.1} parent=1 // pred_check
      _
    $region75: #{tpu_custom_call.1} parent=1 // pred_check_branch
      %998 = sbr.rel (0) target = $region77
    $region76: #{tpu_custom_call.1} parent=1 // pred_region
      %999 = dma.done [#allocation4], 128
    $region77: #{tpu_custom_call.1} parent=1 // pred_fallthru
      _
    %1000 = vsyncpa [#allocation3], 1
    %1001 = vsyncpa [#allocation6], 1
    %1002 = vsyncpa [#allocation9], 1
    %1003 = vsyncpa [#allocation12], 1
    %1004 = vsyncpa [#allocation4], 1

</llo_original>
